<compile_context>
chip_gen: v7x
topology: tpu7x:2x2x1
jax: 0.10.0
libtpu: 0.0.40
codegen_flags: <defaults>
</compile_context>

<pallas_src>
import functools

import jax
import jax.numpy as jnp
from jax import lax
from jax.experimental import pallas as pl
from jax.experimental.pallas import tpu as pltpu


# ----------------------------------------------------------------------------
# Plain-JAX Jacobi basis (mirrors JacobiConv's scalar recurrence).  O(D*K),
# negligible next to the node-streaming passes, so it lives outside the
# kernels (perf review: removes the serial epilogue from pass 1).
# ----------------------------------------------------------------------------
def jacobi_basis(e, ones_vec, alphas, depth, a=1.0, b=1.0, l=-1.0, r=1.0):
    rows = [ones_vec.astype(jnp.float32)]
    for L in range(1, depth + 1):
        if L == 1:
            coef1 = ((a - b) / 2 - (a + b + 2) / 2 * (l + r) / (r - l)) * alphas[0]
            coef2 = ((a + b + 2) / (r - l)) * alphas[0]
            rows.append(coef1 * rows[-1] + coef2 * (e * rows[-1]))
        else:
            coef_l = 2 * L * (L + a + b) * (2 * L - 2 + a + b)
            coef_lm1_1 = (2 * L + a + b - 1) * (2 * L + a + b) * (2 * L + a + b - 2)
            coef_lm1_2 = (2 * L + a + b - 1) * (a ** 2 - b ** 2)
            coef_lm2 = 2 * (L - 1 + a) * (L - 1 + b) * (2 * L + a + b)
            tmp1 = alphas[L - 1] * (coef_lm1_1 / coef_l)
            tmp2 = alphas[L - 1] * (coef_lm1_2 / coef_l)
            tmp3 = alphas[L - 1] * alphas[L - 2] * (coef_lm2 / coef_l)
            tmp1_2 = tmp1 * (2 / (r - l))
            tmp2_2 = tmp1 * ((r + l) / (r - l)) + tmp2
            rows.append(tmp1_2 * (e * rows[-1]) - tmp2_2 * rows[-1] - tmp3 * rows[-2])
    return jnp.stack(rows, axis=0)  # [depth+1, K]


# ----------------------------------------------------------------------------
# Pass 1 kernel: per-split partial accumulation of utx = U^T @ (x @ W + b).
#   grid = (num_splits, tiles_per_split); axis 0 "parallel", axis 1 reduction.
# ----------------------------------------------------------------------------
def _utx_accum_kernel(x_ref,    # VMEM [TN, F]   (mm_dtype)
                      w_ref,    # VMEM [F, C]    (mm_dtype)
                      b_ref,    # VMEM [1, C]    f32
                      u_ref,    # VMEM [TN, K]   (mm_dtype)
                      acc_ref): # VMEM [1, K, C] f32 (resident per-split output)
    i = pl.program_id(1)

    @pl.when(i == 0)
    def _():
        acc_ref[...] = jnp.zeros_like(acc_ref)

    # emb = Linear(x)  (dropouts are identity at inference), f32 accumulation.
    emb = jnp.dot(x_ref[...], w_ref[...],
                  preferred_element_type=jnp.float32) + b_ref[...]

    # Partial utx: contract the node (sublane) axis of U and emb directly on
    # the MXU (transposed-LHS form handled natively by Mosaic -- no explicit
    # U^T copy).
    partial = lax.dot_general(
        u_ref[...], emb.astype(u_ref.dtype),
        dimension_numbers=(((0,), (0,)), ((), ())),
        preferred_element_type=jnp.float32)          # [K, C]
    acc_ref[...] += partial[None]


# ----------------------------------------------------------------------------
# Pass 2 kernel: out_tile = U_tile @ combined.  `combined` arrives already in
# mm_dtype (cast hoisted to the wrapper -- no per-step VPU cast).
# ----------------------------------------------------------------------------
def _stream_out_kernel(u_ref, comb_ref, o_ref):
    o_ref[...] = jnp.dot(u_ref[...], comb_ref[...],
                         preferred_element_type=jnp.float32).astype(o_ref.dtype)


# ----------------------------------------------------------------------------
# Generation-aware sizing helpers.
# ----------------------------------------------------------------------------
def _device_kind():
    try:
        return jax.devices()[0].device_kind.lower()
    except Exception:
        return ""


def _vmem_budget_bytes(kind):
    # v7x has 64 MiB VMEM per TensorCore -> stay well under; v5e/v6e have 128.
    if "v7" in kind:
        return 32 * 1024 * 1024
    return 64 * 1024 * 1024


def _round_up(v, m):
    return ((v + m - 1) // m) * m


def _auto_tile_n(N, F, K, itemsize, vmem_budget, num_splits):
    # Pass 1 double-buffers x[tile, F] and U[tile, K]; use ~half the budget
    # for the streamed tiles, leaving headroom for W / accumulator / pass 2.
    per_row = 2 * (F + K) * max(itemsize, 1)
    tile = (vmem_budget // 2) // per_row
    tile = min(int(tile), 8192)
    tile = max(tile - tile % 256, 256)
    # Don't pad far beyond N for small problems.
    cap = _round_up(max(1, -(-N // num_splits)), 8)
    tile = min(tile, cap)
    tile = max(8, tile - tile % 8)
    return tile


# ----------------------------------------------------------------------------
# Wrapper: two pallas_calls + tiny plain-JAX Jacobi fold in between.
# ----------------------------------------------------------------------------
def jacobi_conv_forward(x, W, b, U, corrected_e, ones_vec, comb_weight, alphas,
                        *, depth, tile_n=None, num_splits=None,
                        mm_dtype=jnp.bfloat16, out_dtype=jnp.float32,
                        vmem_limit_bytes=None):
    N, F = x.shape
    C = W.shape[1]
    K = U.shape[1]

    kind = _device_kind()
    if num_splits is None:
        num_splits = 2 if "v7" in kind else 1     # split the N-reduction across v7x's 2 TCs
    if vmem_limit_bytes is None:
        vmem_limit_bytes = _vmem_budget_bytes(kind)
    mm_itemsize = jnp.dtype(mm_dtype).itemsize
    if tile_n is None:
        tile_n = _auto_tile_n(N, F, K, mm_itemsize, vmem_limit_bytes, num_splits)

    # bf16 (default) MXU operands: cast wrapper-side so HBM traffic halves too;
    # recurrence / accumulators / bias stay f32.
    x_mm = x.astype(mm_dtype)
    W_mm = W.astype(mm_dtype)
    U_mm = U.astype(mm_dtype)
    b_f32 = b.astype(jnp.float32).reshape(1, C)

    # Pad ragged N with zero rows (they contribute nothing to the reduction
    # and produce zero output rows that are sliced off).
    total_tiles = -(-N // tile_n)
    tiles_per_split = -(-total_tiles // num_splits)
    padded_N = num_splits * tiles_per_split * tile_n
    if padded_N != N:
        pad = padded_N - N
        x_mm = jnp.pad(x_mm, ((0, pad), (0, 0)))
        U_mm = jnp.pad(U_mm, ((0, pad), (0, 0)))

    tps = tiles_per_split

    # ---------------- pass 1: partial utx per split -------------------------
    partials = pl.pallas_call(
        _utx_accum_kernel,
        out_shape=jax.ShapeDtypeStruct((num_splits, K, C), jnp.float32),
        grid=(num_splits, tps),
        in_specs=[
            pl.BlockSpec((tile_n, F), lambda p, i: (p * tps + i, 0)),  # x tile
            pl.BlockSpec((F, C), lambda p, i: (0, 0)),                 # W
            pl.BlockSpec((1, C), lambda p, i: (0, 0)),                 # b
            pl.BlockSpec((tile_n, K), lambda p, i: (p * tps + i, 0)),  # U tile
        ],
        out_specs=pl.BlockSpec((1, K, C), lambda p, i: (p, 0, 0)),     # resident accumulator
        compiler_params=pltpu.CompilerParams(
            dimension_semantics=("parallel", "arbitrary"),
            vmem_limit_bytes=vmem_limit_bytes),
        cost_estimate=pl.CostEstimate(
            flops=2 * padded_N * C * (F + K),
            transcendentals=0,
            bytes_accessed=(mm_itemsize * (padded_N * (F + K) + F * C)
                            + 4 * (C + num_splits * K * C))),
    )(x_mm, W_mm, b_f32, U_mm)

    utx = jnp.sum(partials, axis=0)                                    # [K, C]

    # ---------------- plain-JAX Jacobi fold (O(D*K*C), negligible) ----------
    B = jacobi_basis(corrected_e.astype(jnp.float32),
                     ones_vec, alphas, depth)                          # [D+1, K]
    M = jnp.einsum('lk,lc->kc', B,
                   comb_weight.astype(jnp.float32),
                   preferred_element_type=jnp.float32)                 # [K, C]
    combined_mm = (utx * M).astype(mm_dtype)                           # cast once, resident in mm_dtype

    # ---------------- pass 2: stream out = U @ combined ---------------------
    # NOTE: C is model-determined (out_channels); a last dim < 128 means masked
    # stores.  If the surrounding model allows it, pad/pack C toward a multiple
    # of 128 (measure first -- this pass is bandwidth bound).
    n_tiles_2 = padded_N // tile_n
    out = pl.pallas_call(
        _stream_out_kernel,
        out_shape=jax.ShapeDtypeStruct((padded_N, C), out_dtype),
        grid=(n_tiles_2,),
        in_specs=[
            pl.BlockSpec((tile_n, K), lambda i: (i, 0)),               # U tile
            pl.BlockSpec((K, C), lambda i: (0, 0)),                    # combined (mm_dtype)
        ],
        out_specs=pl.BlockSpec((tile_n, C), lambda i: (i, 0)),
        compiler_params=pltpu.CompilerParams(
            dimension_semantics=("parallel",),                         # shard across TCs (v7x)
            vmem_limit_bytes=vmem_limit_bytes),
        cost_estimate=pl.CostEstimate(
            flops=2 * padded_N * K * C,
            transcendentals=0,
            bytes_accessed=(mm_itemsize * (padded_N * K + K * C)
                            + jnp.dtype(out_dtype).itemsize * padded_N * C)),
    )(U_mm, combined_mm)

    if padded_N != N:
        out = out[:N]
    return out


# ----------------------------------------------------------------------------
# Pure-JAX reference (mirrors the torch code) for a correctness check.
# ----------------------------------------------------------------------------
def reference(x, W, b, U, e, ones_vec, comb_weight, alphas, depth,
              a=1.0, bb=1.0, l=-1.0, r=1.0):
    emb = x @ W + b
    utx = U.T @ emb
    xs = [ones_vec]
    for L in range(1, depth + 1):
        if L == 1:
            coef1 = ((a - bb) / 2 - (a + bb + 2) / 2 * (l + r) / (r - l)) * alphas[0]
            coef2 = ((a + bb + 2) / (r - l)) * alphas[0]
            nx = coef1 * xs[-1] + coef2 * (e * xs[-1])
        else:
            coef_l = 2 * L * (L + a + bb) * (2 * L - 2 + a + bb)
            coef_lm1_1 = (2 * L + a + bb - 1) * (2 * L + a + bb) * (2 * L + a + bb - 2)
            coef_lm1_2 = (2 * L + a + bb - 1) * (a ** 2 - bb ** 2)
            coef_lm2 = 2 * (L - 1 + a) * (L - 1 + bb) * (2 * L + a + bb)
            tmp1 = alphas[L - 1] * (coef_lm1_1 / coef_l)
            tmp2 = alphas[L - 1] * (coef_lm1_2 / coef_l)
            tmp3 = alphas[L - 1] * alphas[L - 2] * (coef_lm2 / coef_l)
            tmp1_2 = tmp1 * (2 / (r - l))
            tmp2_2 = tmp1 * ((r + l) / (r - l)) + tmp2
            nx = tmp1_2 * (e * xs[-1]) - tmp2_2 * xs[-1] - tmp3 * xs[-2]
        xs.append(nx)
    stacked = [(xi[:, None] * utx)[:, None, :] for xi in xs]     # [K,1,C] each
    xcat = jnp.concatenate(stacked, axis=1)                      # [K,D+1,C]
    xcat = xcat * comb_weight[None, :, :]
    xsum = jnp.sum(xcat, axis=1)                                 # [K,C]
    return U @ xsum                                              # [N,C]


if __name__ == "__main__":
    # Small, deterministic example shapes.
    N, F, C, K = 256, 32, 16, 64      # nodes, in-features, out_channels, eig comps
    depth = 3
    basealpha = 1.0

    key = jax.random.PRNGKey(0)
    kx, kw, kb, ku, ke = jax.random.split(key, 5)

    x = jax.random.normal(kx, (N, F), dtype=jnp.float32)
    W = jax.random.normal(kw, (F, C), dtype=jnp.float32) / jnp.sqrt(F)
    b = 0.01 * jax.random.normal(kb, (1, C), dtype=jnp.float32)
    U = jax.random.normal(ku, (N, K), dtype=jnp.float32) / jnp.sqrt(N)
    corrected_e = jax.random.uniform(ke, (K,), dtype=jnp.float32,
                                     minval=-1.0, maxval=1.0)
    ones_vec = jnp.ones((K,), dtype=jnp.float32)

    # Parameters from __init__: alphas params = min(1/alpha, 1); comb_weight = ones.
    alpha_params = [jnp.float32(min(1.0 / basealpha, 1.0)) for _ in range(depth + 1)]
    alphas = [basealpha * jnp.tanh(p) for p in alpha_params]
    comb_weight = jnp.ones((depth + 1, C), dtype=jnp.float32)  # squeezed (1,D+1,C)

    ref = reference(x, W, b, U, corrected_e, ones_vec, comb_weight, alphas, depth)

    # --- default path: bf16 MXU operands, auto tile / split / VMEM budget ---
    out_bf16 = jacobi_conv_forward(
        x, W, b, U, corrected_e, ones_vec, comb_weight, alphas, depth=depth)
    out_bf16 = jax.block_until_ready(out_bf16)
    assert out_bf16.shape == (N, C)
    assert jnp.allclose(out_bf16, ref, rtol=5e-2, atol=5e-2), "bf16 mismatch vs. reference"

    # --- f32 MXU path, explicit tiling + forced 2-way reduction split --------
    out_f32 = jacobi_conv_forward(
        x, W, b, U, corrected_e, ones_vec, comb_weight, alphas, depth=depth,
        tile_n=128, num_splits=2, mm_dtype=jnp.float32)
    out_f32 = jax.block_until_ready(out_f32)
    assert out_f32.shape == (N, C)
    assert jnp.allclose(out_f32, ref, rtol=1e-3, atol=1e-3), "f32 mismatch vs. reference"

    # --- ragged N (exercises zero-row padding + slice-off) -------------------
    N_r = 200
    x_r, U_r = x[:N_r], U[:N_r]
    ref_r = reference(x_r, W, b, U_r, corrected_e, ones_vec, comb_weight, alphas, depth)
    out_r = jacobi_conv_forward(
        x_r, W, b, U_r, corrected_e, ones_vec, comb_weight, alphas, depth=depth,
        tile_n=64, num_splits=2, mm_dtype=jnp.float32)
    out_r = jax.block_until_ready(out_r)
    assert out_r.shape == (N_r, C)
    assert jnp.allclose(out_r, ref_r, rtol=1e-3, atol=1e-3), "ragged-N mismatch vs. reference"

    # edge_index / edge_attr are unused by the spectral forward (no-op here).
    print("KERNEL_OK")
</pallas_src>

<mosaic_0001>
module attributes {stable_mosaic.version = 11 : i64} {
  func.func @_utx_accum_kernel(%arg0: i32, %arg1: i32, %arg2: memref<256x32xbf16, #tpu.memory_space<vmem>>, %arg3: memref<32x16xbf16, #tpu.memory_space<vmem>>, %arg4: memref<1x16xf32, #tpu.memory_space<vmem>>, %arg5: memref<256x64xbf16, #tpu.memory_space<vmem>>, %arg6: memref<1x64x16xf32, #tpu.memory_space<vmem>>) attributes {dimension_semantics = [#tpu.dimension_semantics<parallel>, #tpu.dimension_semantics<arbitrary>], iteration_bounds = array<i64: 1, 1>, scalar_prefetch = 0 : i64, scratch_operands = 0 : i64, tpu.core_type = #tpu.core_type<tc>, window_params = [{transform_indices = @transform_0, window_bounds = array<i64: 256, 32>}, {pipeline_mode = #tpu.pipeline_mode<synchronous>, transform_indices = @transform_1, window_bounds = array<i64: 32, 16>}, {pipeline_mode = #tpu.pipeline_mode<synchronous>, transform_indices = @transform_2, window_bounds = array<i64: 1, 16>}, {transform_indices = @transform_3, window_bounds = array<i64: 256, 64>}, {transform_indices = @transform_4, window_bounds = array<i64: 1, 64, 16>}]} {
    %c0_i32 = arith.constant 0 : i32
    %0 = arith.cmpi eq, %arg1, %c0_i32 : i32
    %1 = arith.extui %0 : i1 to i32
    %c0_i32_0 = arith.constant 0 : i32
    %2 = arith.cmpi ne, %1, %c0_i32_0 : i32
    scf.if %2 {
      %cst_15 = arith.constant 0.000000e+00 : f32
      %16 = vector.broadcast %cst_15 : f32 to vector<1x64x16xf32>
      %c0_16 = arith.constant 0 : index
      %c0_17 = arith.constant 0 : index
      %c0_18 = arith.constant 0 : index
      %17 = vector.load %arg6[%c0_16, %c0_17, %c0_18] : memref<1x64x16xf32, #tpu.memory_space<vmem>>, vector<1x64x16xf32>
      tpu.vector_store %arg6[%c0_16, %c0_17, %c0_18], %16 {strides = array<i32>} : memref<1x64x16xf32, #tpu.memory_space<vmem>>, vector<1x64x16xf32>,
    } else {
    }
    %c0 = arith.constant 0 : index
    %c0_1 = arith.constant 0 : index
    %3 = vector.load %arg2[%c0, %c0_1] : memref<256x32xbf16, #tpu.memory_space<vmem>>, vector<256x32xbf16>
    %c0_2 = arith.constant 0 : index
    %c0_3 = arith.constant 0 : index
    %4 = vector.load %arg3[%c0_2, %c0_3] : memref<32x16xbf16, #tpu.memory_space<vmem>>, vector<32x16xbf16>
    %cst = arith.constant dense<0.000000e+00> : vector<256x16xf32>
    %5 = tpu.matmul %3, %4, %cst {dimension_numbers = #tpu.dot_dimension_numbers<[1], [0], [0], [1], [0, 0, 1, 1], [], []>} : vector<256x32xbf16>, vector<32x16xbf16>, vector<256x16xf32> -> vector<256x16xf32>
    %c0_4 = arith.constant 0 : index
    %c0_5 = arith.constant 0 : index
    %6 = vector.load %arg4[%c0_4, %c0_5] : memref<1x16xf32, #tpu.memory_space<vmem>>, vector<1x16xf32>
    %7 = vector.broadcast %6 : vector<1x16xf32> to vector<256x16xf32>
    %8 = arith.addf %5, %7 : vector<256x16xf32>
    %c0_6 = arith.constant 0 : index
    %c0_7 = arith.constant 0 : index
    %9 = vector.load %arg5[%c0_6, %c0_7] : memref<256x64xbf16, #tpu.memory_space<vmem>>, vector<256x64xbf16>
    %10 = arith.truncf %8 : vector<256x16xf32> to vector<256x16xbf16>
    %cst_8 = arith.constant dense<0.000000e+00> : vector<64x16xf32>
    %11 = tpu.matmul %9, %10, %cst_8 {dimension_numbers = #tpu.dot_dimension_numbers<[0], [0], [1], [1], [0, 1, 1, 1], [], []>} : vector<256x64xbf16>, vector<256x16xbf16>, vector<64x16xf32> -> vector<64x16xf32>
    %c0_9 = arith.constant 0 : index
    %c0_10 = arith.constant 0 : index
    %c0_11 = arith.constant 0 : index
    %12 = vector.load %arg6[%c0_9, %c0_10, %c0_11] : memref<1x64x16xf32, #tpu.memory_space<vmem>>, vector<1x64x16xf32>
    %13 = vector.shape_cast %11 : vector<64x16xf32> to vector<1x64x16xf32>
    %14 = arith.addf %12, %13 : vector<1x64x16xf32>
    %c0_12 = arith.constant 0 : index
    %c0_13 = arith.constant 0 : index
    %c0_14 = arith.constant 0 : index
    %15 = vector.load %arg6[%c0_12, %c0_13, %c0_14] : memref<1x64x16xf32, #tpu.memory_space<vmem>>, vector<1x64x16xf32>
    tpu.vector_store %arg6[%c0_12, %c0_13, %c0_14], %14 {strides = array<i32>} : memref<1x64x16xf32, #tpu.memory_space<vmem>>, vector<1x64x16xf32>,
    return
  }
  func.func @transform_0(%arg0: i32, %arg1: i32) -> (i32, i32) {
    %c1_i32 = arith.constant 1 : i32
    %0 = arith.muli %arg0, %c1_i32 : i32
    %1 = arith.addi %0, %arg1 : i32
    %c0_i32 = arith.constant 0 : i32
    %c0_i32_0 = arith.constant 0 : i32
    return %1, %c0_i32 : i32, i32
  }
  func.func @transform_1(%arg0: i32, %arg1: i32) -> (i32, i32) {
    %c0_i32 = arith.constant 0 : i32
    %c0_i32_0 = arith.constant 0 : i32
    %c0_i32_1 = arith.constant 0 : i32
    return %c0_i32, %c0_i32_0 : i32, i32
  }
  func.func @transform_2(%arg0: i32, %arg1: i32) -> (i32, i32) {
    %c0_i32 = arith.constant 0 : i32
    %c0_i32_0 = arith.constant 0 : i32
    %c0_i32_1 = arith.constant 0 : i32
    return %c0_i32, %c0_i32_0 : i32, i32
  }
  func.func @transform_3(%arg0: i32, %arg1: i32) -> (i32, i32) {
    %c1_i32 = arith.constant 1 : i32
    %0 = arith.muli %arg0, %c1_i32 : i32
    %1 = arith.addi %0, %arg1 : i32
    %c0_i32 = arith.constant 0 : i32
    %c0_i32_0 = arith.constant 0 : i32
    return %1, %c0_i32 : i32, i32
  }
  func.func @transform_4(%arg0: i32, %arg1: i32) -> (i32, i32, i32) {
    %c0_i32 = arith.constant 0 : i32
    %c0_i32_0 = arith.constant 0 : i32
    %c0_i32_1 = arith.constant 0 : i32
    return %arg0, %c0_i32, %c0_i32_0 : i32, i32, i32
  }
}

</mosaic_0001>

<llo_original>
// kernel: tpu_custom_call.1
$region0: #{tpu_custom_call.1}
  #allocation0 [shape = 'u32[]', space=smem, size = 0x4, offset = 0x4, fixed_abs, tag = 'smem constant byte address 0x4 - core index']
  #allocation1 [shape = 'u32[144,128]{1,0:T(1,128)}', space=vmem, size = 0x12000, scoped, tag = 'internal scratch']
  %s0 = inlined_call_operand.hbm [shape: bf16[256,32], index: 0, kind: input, shape index: {}]
  %s1 = inlined_call_operand.hbm [shape: bf16[32,16], index: 1, kind: input, shape index: {}]
  %s2 = inlined_call_operand.hbm [shape: f32[1,16], index: 2, kind: input, shape index: {}]
  %s3 = inlined_call_operand.hbm [shape: bf16[256,64], index: 3, kind: input, shape index: {}]
  %s4 = inlined_call_operand.hbm [shape: f32[1,64,16], index: 4, kind: output, shape index: {}]
  %s5 = sld [smem:[#allocation0]]
  $region46: #{tpu_custom_call.1} parent=0
    _
  %s7 = ssub.s32 1, %s5
  %s8 = scalar_select 0, %s7, %s5
  $region1: #{tpu_custom_call.1} parent=0
    #allocation2 [shape = 'u8[65536]{0}', space=vmem, size = 0x10000, scoped, tag = 'input window, operand 0, single buffered']
    #allocation3 [shape = 's32[1]{0}', space=sflag, size = 0x4, scoped, tag = 'scoped memory for tpu_custom_call.1']
    #allocation4 [shape = 's32[1]{0}', space=sflag, size = 0x4, scoped, tag = 'scoped memory for tpu_custom_call.1']
    #allocation5 [shape = 'u8[8192]{0}', space=vmem, size = 0x2000, scoped, tag = 'input window, operand 1, single buffered']
    #allocation6 [shape = 's32[1]{0}', space=sflag, size = 0x4, scoped, tag = 'scoped memory for tpu_custom_call.1']
    #allocation7 [shape = 'u8[512]{0}', space=vmem, size = 0x400, scoped, tag = 'input window, operand 2, single buffered']
    #allocation8 [shape = 'u8[65536]{0}', space=vmem, size = 0x10000, scoped, tag = 'input window, operand 3, single buffered']
    #allocation9 [shape = 's32[1]{0}', space=sflag, size = 0x4, scoped, tag = 'scoped memory for tpu_custom_call.1']
    #allocation10 [shape = 'u8[32768]{0}', space=vmem, size = 0x8000, scoped, tag = 'output window, operand 0, single buffered']
    %9 = vsyncpa [#allocation3], 0
    %10 = vsyncpa [#allocation6], 0
    %11 = vsyncpa [#allocation9], 0
    %12 = vsyncpa [#allocation4], 0
    // Predicated region
    $region2: #{tpu_custom_call.1} parent=1 // pred_check
      _
    $region3: #{tpu_custom_call.1} parent=1 // pred_check_branch
      %14 = sbr.rel (0) target = $region5
    $region4: #{tpu_custom_call.1} parent=1 // pred_region
      %s15 = sadd.s32 0, 0
      %s16 = smul.u32 32, %s15
      %s18 = ssub.s32 2048, 2048
      %19 = vsyncadd [#allocation3], %s18
      %s20 = smul.addr %s16, 64
      %s21 = scalar_lea.hbm %s0, %s20
      %s22 = sshll.u32 [#allocation2], 4
      %s23 = int_to_ptr.vmem [resolvable:$true] %s22
      %28 = dma.hbm_to_vmem [thread:$0]  %s21, 2048, %s23, [#allocation3], 64, 64, 4
    $region5: #{tpu_custom_call.1} parent=1 // pred_fallthru
      _
    // Predicated region
    $region6: #{tpu_custom_call.1} parent=1 // pred_check
      _
    $region7: #{tpu_custom_call.1} parent=1 // pred_check_branch
      %30 = sbr.rel (0) target = $region9
    $region8: #{tpu_custom_call.1} parent=1 // pred_region
      %s32 = ssub.s32 256, 256
      %33 = vsyncadd [#allocation6], %s32
      %s34 = sshll.u32 [#allocation5], 4
      %s35 = int_to_ptr.vmem [resolvable:$true] %s34
      %40 = dma.hbm_to_vmem [thread:$0]  %s1, 256, %s35, [#allocation6], 64, 64, 4
    $region9: #{tpu_custom_call.1} parent=1 // pred_fallthru
      _
    // Predicated region
    $region10: #{tpu_custom_call.1} parent=1 // pred_check
      _
    $region11: #{tpu_custom_call.1} parent=1 // pred_check_branch
      %42 = sbr.rel (0) target = $region13
    $region12: #{tpu_custom_call.1} parent=1 // pred_region
      %s44 = ssub.s32 16, 16
      %45 = vsyncadd [#allocation6], %s44
      %s47 = sshll.u32 [#allocation7], 4
      %s48 = int_to_ptr.vmem [resolvable:$true] %s47
      %50 = dma.hbm_to_vmem [thread:$0]  %s2, 16, %s48, [#allocation6]
    $region13: #{tpu_custom_call.1} parent=1 // pred_fallthru
      _
    // Predicated region
    $region14: #{tpu_custom_call.1} parent=1 // pred_check
      _
    $region15: #{tpu_custom_call.1} parent=1 // pred_check_branch
      %52 = sbr.rel (0) target = $region17
    $region16: #{tpu_custom_call.1} parent=1 // pred_region
      %s53 = sadd.s32 0, 0
      %s54 = smul.u32 32, %s53
      %s56 = ssub.s32 2048, 2048
      %57 = vsyncadd [#allocation9], %s56
      %s58 = smul.addr %s54, 64
      %s59 = scalar_lea.hbm %s3, %s58
      %s60 = sshll.u32 [#allocation8], 4
      %s61 = int_to_ptr.vmem [resolvable:$true] %s60
      %66 = dma.hbm_to_vmem [thread:$0]  %s59, 2048, %s61, [#allocation9], 64, 64, 4
    $region17: #{tpu_custom_call.1} parent=1 // pred_fallthru
      _
    // Predicated region
    $region18: #{tpu_custom_call.1} parent=1 // pred_check
      _
    $region19: #{tpu_custom_call.1} parent=1 // pred_check_branch
      %68 = sbr.rel (0) target = $region21
    $region20: #{tpu_custom_call.1} parent=1 // pred_region
      %69 = dma.done [#allocation3], 2048
    $region21: #{tpu_custom_call.1} parent=1 // pred_fallthru
      _
    // Predicated region
    $region22: #{tpu_custom_call.1} parent=1 // pred_check
      _
    $region23: #{tpu_custom_call.1} parent=1 // pred_check_branch
      %71 = sbr.rel (0) target = $region25
    $region24: #{tpu_custom_call.1} parent=1 // pred_region
      %72 = dma.done [#allocation6], 256
    $region25: #{tpu_custom_call.1} parent=1 // pred_fallthru
      _
    // Predicated region
    $region26: #{tpu_custom_call.1} parent=1 // pred_check
      _
    $region27: #{tpu_custom_call.1} parent=1 // pred_check_branch
      %74 = sbr.rel (0) target = $region29
    $region28: #{tpu_custom_call.1} parent=1 // pred_region
      %75 = dma.done [#allocation6], 16
    $region29: #{tpu_custom_call.1} parent=1 // pred_fallthru
      _
    // Predicated region
    $region30: #{tpu_custom_call.1} parent=1 // pred_check
      _
    $region31: #{tpu_custom_call.1} parent=1 // pred_check_branch
      %77 = sbr.rel (0) target = $region33
    $region32: #{tpu_custom_call.1} parent=1 // pred_region
      %78 = dma.done [#allocation9], 2048
    $region33: #{tpu_custom_call.1} parent=1 // pred_fallthru
      _
    %s79 = sadd.s32 0, 0
    %s80 = smul.u32 32, %s79
    %s81 = sadd.s32 0, 0
    %s82 = smul.u32 32, %s81
    %p84 = scmp.eq.s32.totalorder 0, 0
    // Predicated region
    $region34: #{tpu_custom_call.1} parent=1 // pred_check
      %p85 = pneg %p84
    $region35: #{tpu_custom_call.1} parent=1 // pred_check_branch
      %87 = sbr.rel (%p85) target = $region37
    $region36: #{tpu_custom_call.1} parent=1 // pred_region
      %vm88 = vcmask 130048
      %89 = vst.msk [vmem:[#allocation10] sm:$0xff] %vm88, 0.0
      %90 = vst.msk [vmem:[#allocation10 + $0x8] sm:$0xff] %vm88, 0.0
      %91 = vst.msk [vmem:[#allocation10 + $0x10] sm:$0xff] %vm88, 0.0
      %92 = vst.msk [vmem:[#allocation10 + $0x18] sm:$0xff] %vm88, 0.0
      %93 = vst.msk [vmem:[#allocation10 + $0x20] sm:$0xff] %vm88, 0.0
      %94 = vst.msk [vmem:[#allocation10 + $0x28] sm:$0xff] %vm88, 0.0
      %95 = vst.msk [vmem:[#allocation10 + $0x30] sm:$0xff] %vm88, 0.0
      %96 = vst.msk [vmem:[#allocation10 + $0x38] sm:$0xff] %vm88, 0.0
    $region37: #{tpu_custom_call.1} parent=1 // pred_fallthru
      _
    %v97 = vld [vmem:[#allocation2] sm:$0xf]
    %v98 = vld [vmem:[#allocation2 + $0x4] sm:$0xf]
    %v99 = vld [vmem:[#allocation2 + $0x8] sm:$0xf]
    %v100 = vld [vmem:[#allocation2 + $0xc] sm:$0xf]
    %v101 = vld [vmem:[#allocation2 + $0x10] sm:$0xf]
    %v102 = vld [vmem:[#allocation2 + $0x14] sm:$0xf]
    %v103 = vld [vmem:[#allocation2 + $0x18] sm:$0xf]
    %v104 = vld [vmem:[#allocation2 + $0x1c] sm:$0xf]
    %v105 = vld [vmem:[#allocation2 + $0x20] sm:$0xf]
    %v106 = vld [vmem:[#allocation2 + $0x24] sm:$0xf]
    %v107 = vld [vmem:[#allocation2 + $0x28] sm:$0xf]
    %v108 = vld [vmem:[#allocation2 + $0x2c] sm:$0xf]
    %v109 = vld [vmem:[#allocation2 + $0x30] sm:$0xf]
    %v110 = vld [vmem:[#allocation2 + $0x34] sm:$0xf]
    %v111 = vld [vmem:[#allocation2 + $0x38] sm:$0xf]
    %v112 = vld [vmem:[#allocation2 + $0x3c] sm:$0xf]
    %v113 = vld [vmem:[#allocation2 + $0x40] sm:$0xf]
    %v114 = vld [vmem:[#allocation2 + $0x44] sm:$0xf]
    %v115 = vld [vmem:[#allocation2 + $0x48] sm:$0xf]
    %v116 = vld [vmem:[#allocation2 + $0x4c] sm:$0xf]
    %v117 = vld [vmem:[#allocation2 + $0x50] sm:$0xf]
    %v118 = vld [vmem:[#allocation2 + $0x54] sm:$0xf]
    %v119 = vld [vmem:[#allocation2 + $0x58] sm:$0xf]
    %v120 = vld [vmem:[#allocation2 + $0x5c] sm:$0xf]
    %v121 = vld [vmem:[#allocation2 + $0x60] sm:$0xf]
    %v122 = vld [vmem:[#allocation2 + $0x64] sm:$0xf]
    %v123 = vld [vmem:[#allocation2 + $0x68] sm:$0xf]
    %v124 = vld [vmem:[#allocation2 + $0x6c] sm:$0xf]
    %v125 = vld [vmem:[#allocation2 + $0x70] sm:$0xf]
    %v126 = vld [vmem:[#allocation2 + $0x74] sm:$0xf]
    %v127 = vld [vmem:[#allocation2 + $0x78] sm:$0xf]
    %v128 = vld [vmem:[#allocation2 + $0x7c] sm:$0xf]
    %v129 = vld [vmem:[#allocation5] sm:$0xf]
    %v130 = vld [vmem:[#allocation5 + $0x4] sm:$0xf]
    %v131 = vld [vmem:[#allocation5 + $0x8] sm:$0xf]
    %v132 = vld [vmem:[#allocation5 + $0xc] sm:$0xf]
    %v133 = vld [vmem:[#allocation7] sm:$0x1]
    %v135 = vlaneseq
    %v136 = vshrl.u32 %v135, 7
    %v137 = vsub.s32 0, %v136
    %v138 = vrot.slane %v133, %v137
    %v172 = vunpack.c.l.b16 %v97
    %v173 = vunpack.c.l.b16 %v98
    %v174 = vunpack.c.l.b16 %v99
    %v175 = vunpack.c.l.b16 %v100
    %v176 = vunpack.c.l.b16 %v101
    %v177 = vunpack.c.l.b16 %v102
    %v178 = vunpack.c.l.b16 %v103
    %v179 = vunpack.c.l.b16 %v104
    %v180 = vunpack.c.l.b16 %v105
    %v181 = vunpack.c.l.b16 %v106
    %v182 = vunpack.c.l.b16 %v107
    %v183 = vunpack.c.l.b16 %v108
    %v184 = vunpack.c.l.b16 %v109
    %v185 = vunpack.c.l.b16 %v110
    %v186 = vunpack.c.l.b16 %v111
    %v187 = vunpack.c.l.b16 %v112
    %v188 = vunpack.c.l.b16 %v113
    %v189 = vunpack.c.l.b16 %v114
    %v190 = vunpack.c.l.b16 %v115
    %v191 = vunpack.c.l.b16 %v116
    %v192 = vunpack.c.l.b16 %v117
    %v193 = vunpack.c.l.b16 %v118
    %v194 = vunpack.c.l.b16 %v119
    %v195 = vunpack.c.l.b16 %v120
    %v196 = vunpack.c.l.b16 %v121
    %v197 = vunpack.c.l.b16 %v122
    %v198 = vunpack.c.l.b16 %v123
    %v199 = vunpack.c.l.b16 %v124
    %v200 = vunpack.c.l.b16 %v125
    %v201 = vunpack.c.l.b16 %v126
    %v202 = vunpack.c.l.b16 %v127
    %v203 = vunpack.c.l.b16 %v128
    %v204 = vpack.c.b16 %v173, %v172
    %v205 = vpack.c.b16 %v175, %v174
    %v206 = vpack.c.b16 %v177, %v176
    %v207 = vpack.c.b16 %v179, %v178
    %v208 = vpack.c.b16 %v181, %v180
    %v209 = vpack.c.b16 %v183, %v182
    %v210 = vpack.c.b16 %v185, %v184
    %v211 = vpack.c.b16 %v187, %v186
    %v212 = vpack.c.b16 %v189, %v188
    %v213 = vpack.c.b16 %v191, %v190
    %v214 = vpack.c.b16 %v193, %v192
    %v215 = vpack.c.b16 %v195, %v194
    %v216 = vpack.c.b16 %v197, %v196
    %v217 = vpack.c.b16 %v199, %v198
    %v218 = vpack.c.b16 %v201, %v200
    %v219 = vpack.c.b16 %v203, %v202
    %v224 = vunpack.c.l.b16 %v129
    %v225 = vunpack.c.l.b16 %v130
    %v226 = vunpack.c.l.b16 %v131
    %v227 = vunpack.c.l.b16 %v132
    %v228 = vpack.c.b16 %v225, %v224
    %v229 = vpack.c.b16 %v227, %v226
    %vm232 = vcmask 261120
    %v234 = vsel %vm232, %v204, 0
    %v237 = vsel %vm232, %v205, 0
    %v240 = vsel %vm232, %v206, 0
    %v243 = vsel %vm232, %v207, 0
    %v246 = vsel %vm232, %v208, 0
    %v249 = vsel %vm232, %v209, 0
    %v252 = vsel %vm232, %v210, 0
    %v255 = vsel %vm232, %v211, 0
    %v258 = vsel %vm232, %v212, 0
    %v261 = vsel %vm232, %v213, 0
    %v264 = vsel %vm232, %v214, 0
    %v267 = vsel %vm232, %v215, 0
    %v270 = vsel %vm232, %v216, 0
    %v273 = vsel %vm232, %v217, 0
    %v276 = vsel %vm232, %v218, 0
    %v279 = vsel %vm232, %v219, 0
    %281 = vmatprep.subr.bf16.mxu0 0
    %282 = vmatpush1.bf16.msra.mxu0 %v228
    %283 = vmatprep.subr.bf16.mxu0 0
    %284 = vmatpush1.bf16.msra.mxu0 %v229
    %285 = vmatprep.subr.bf16.mxu0 0
    %286 = vmatpush1.bf16.msra.mxu0 0
    %287 = vmatprep.subr.bf16.mxu0 0
    %288 = vmatpush1.bf16.msra.mxu0 0
    %289 = vmatprep.subr.bf16.mxu0 0
    %290 = vmatpush1.bf16.msra.mxu0 0
    %291 = vmatprep.subr.bf16.mxu0 0
    %292 = vmatpush1.bf16.msra.mxu0 0
    %293 = vmatprep.subr.bf16.mxu0 0
    %294 = vmatpush1.bf16.msra.mxu0 0
    %295 = vmatprep.subr.bf16.mxu0 0
    %296 = vmatpush1.bf16.msra.mxu0 0
    %297 = vmatprep.subr.bf16.mxu0 0
    %298 = vmatpush1.bf16.msra.mxu0 0
    %299 = vmatprep.subr.bf16.mxu0 0
    %300 = vmatpush1.bf16.msra.mxu0 0
    %301 = vmatprep.subr.bf16.mxu0 0
    %302 = vmatpush1.bf16.msra.mxu0 0
    %303 = vmatprep.subr.bf16.mxu0 0
    %304 = vmatpush1.bf16.msra.mxu0 0
    %305 = vmatprep.subr.bf16.mxu0 0
    %306 = vmatpush1.bf16.msra.mxu0 0
    %307 = vmatprep.subr.bf16.mxu0 0
    %308 = vmatpush1.bf16.msra.mxu0 0
    %309 = vmatprep.subr.bf16.mxu0 0
    %310 = vmatpush1.bf16.msra.mxu0 0
    %311 = vmatprep.subr.bf16.mxu0 0
    %312 = vmatpush1.bf16.msra.mxu0 0
    %313 = vmatprep.mubr.bf16.mxu0 0
    %314 = vmatmul.mubr.bf16.gmra.mrb[0].mxu0 %v234
    %v315 = vpop.f32.mrb[0].mxu0
    %v316 = vadd.f32 %v138, %v315
    %v317 = vpop.f32.mrb[0].mxu0
    %v318 = vpop.f32.mrb[0].mxu0
    %v319 = vadd.f32 %v138, %v318
    %v320 = vpop.f32.mrb[0].mxu0
    %321 = vmatprep.mubr.bf16.mxu0 0
    %322 = vmatmul.mubr.bf16.gmra.mrb[0].mxu0 %v237
    %v323 = vpop.f32.mrb[0].mxu0
    %v324 = vadd.f32 %v138, %v323
    %v325 = vpop.f32.mrb[0].mxu0
    %v326 = vpop.f32.mrb[0].mxu0
    %v327 = vadd.f32 %v138, %v326
    %v328 = vpop.f32.mrb[0].mxu0
    %329 = vmatprep.mubr.bf16.mxu0 0
    %330 = vmatmul.mubr.bf16.gmra.mrb[0].mxu0 %v240
    %v331 = vpop.f32.mrb[0].mxu0
    %v332 = vadd.f32 %v138, %v331
    %v333 = vpop.f32.mrb[0].mxu0
    %v334 = vpop.f32.mrb[0].mxu0
    %v335 = vadd.f32 %v138, %v334
    %v336 = vpop.f32.mrb[0].mxu0
    %337 = vmatprep.mubr.bf16.mxu0 0
    %338 = vmatmul.mubr.bf16.gmra.mrb[0].mxu0 %v243
    %v339 = vpop.f32.mrb[0].mxu0
    %v340 = vadd.f32 %v138, %v339
    %v341 = vpop.f32.mrb[0].mxu0
    %v342 = vpop.f32.mrb[0].mxu0
    %v343 = vadd.f32 %v138, %v342
    %v344 = vpop.f32.mrb[0].mxu0
    %345 = vmatprep.mubr.bf16.mxu0 0
    %346 = vmatmul.mubr.bf16.gmra.mrb[0].mxu0 %v246
    %v347 = vpop.f32.mrb[0].mxu0
    %v348 = vadd.f32 %v138, %v347
    %v349 = vpop.f32.mrb[0].mxu0
    %v350 = vpop.f32.mrb[0].mxu0
    %v351 = vadd.f32 %v138, %v350
    %v352 = vpop.f32.mrb[0].mxu0
    %353 = vmatprep.mubr.bf16.mxu0 0
    %354 = vmatmul.mubr.bf16.gmra.mrb[0].mxu0 %v249
    %v355 = vpop.f32.mrb[0].mxu0
    %v356 = vadd.f32 %v138, %v355
    %v357 = vpop.f32.mrb[0].mxu0
    %v358 = vpop.f32.mrb[0].mxu0
    %v359 = vadd.f32 %v138, %v358
    %v360 = vpop.f32.mrb[0].mxu0
    %361 = vmatprep.mubr.bf16.mxu0 0
    %362 = vmatmul.mubr.bf16.gmra.mrb[0].mxu0 %v252
    %v363 = vpop.f32.mrb[0].mxu0
    %v364 = vadd.f32 %v138, %v363
    %v365 = vpop.f32.mrb[0].mxu0
    %v366 = vpop.f32.mrb[0].mxu0
    %v367 = vadd.f32 %v138, %v366
    %v368 = vpop.f32.mrb[0].mxu0
    %369 = vmatprep.mubr.bf16.mxu0 0
    %370 = vmatmul.mubr.bf16.gmra.mrb[0].mxu0 %v255
    %v371 = vpop.f32.mrb[0].mxu0
    %v372 = vadd.f32 %v138, %v371
    %v373 = vpop.f32.mrb[0].mxu0
    %v374 = vpop.f32.mrb[0].mxu0
    %v375 = vadd.f32 %v138, %v374
    %v376 = vpop.f32.mrb[0].mxu0
    %377 = vmatprep.mubr.bf16.mxu0 0
    %378 = vmatmul.mubr.bf16.gmra.mrb[0].mxu0 %v258
    %v379 = vpop.f32.mrb[0].mxu0
    %v380 = vadd.f32 %v138, %v379
    %v381 = vpop.f32.mrb[0].mxu0
    %v382 = vpop.f32.mrb[0].mxu0
    %v383 = vadd.f32 %v138, %v382
    %v384 = vpop.f32.mrb[0].mxu0
    %385 = vmatprep.mubr.bf16.mxu0 0
    %386 = vmatmul.mubr.bf16.gmra.mrb[0].mxu0 %v261
    %v387 = vpop.f32.mrb[0].mxu0
    %v388 = vadd.f32 %v138, %v387
    %v389 = vpop.f32.mrb[0].mxu0
    %v390 = vpop.f32.mrb[0].mxu0
    %v391 = vadd.f32 %v138, %v390
    %v392 = vpop.f32.mrb[0].mxu0
    %393 = vmatprep.mubr.bf16.mxu0 0
    %394 = vmatmul.mubr.bf16.gmra.mrb[0].mxu0 %v264
    %v395 = vpop.f32.mrb[0].mxu0
    %v396 = vadd.f32 %v138, %v395
    %v397 = vpop.f32.mrb[0].mxu0
    %v398 = vpop.f32.mrb[0].mxu0
    %v399 = vadd.f32 %v138, %v398
    %v400 = vpop.f32.mrb[0].mxu0
    %401 = vmatprep.mubr.bf16.mxu0 0
    %402 = vmatmul.mubr.bf16.gmra.mrb[0].mxu0 %v267
    %v403 = vpop.f32.mrb[0].mxu0
    %v404 = vadd.f32 %v138, %v403
    %v405 = vpop.f32.mrb[0].mxu0
    %v406 = vpop.f32.mrb[0].mxu0
    %v407 = vadd.f32 %v138, %v406
    %v408 = vpop.f32.mrb[0].mxu0
    %409 = vmatprep.mubr.bf16.mxu0 0
    %410 = vmatmul.mubr.bf16.gmra.mrb[0].mxu0 %v270
    %v411 = vpop.f32.mrb[0].mxu0
    %v412 = vadd.f32 %v138, %v411
    %v413 = vpop.f32.mrb[0].mxu0
    %v414 = vpop.f32.mrb[0].mxu0
    %v415 = vadd.f32 %v138, %v414
    %v416 = vpop.f32.mrb[0].mxu0
    %417 = vmatprep.mubr.bf16.mxu0 0
    %418 = vmatmul.mubr.bf16.gmra.mrb[0].mxu0 %v273
    %v419 = vpop.f32.mrb[0].mxu0
    %v420 = vadd.f32 %v138, %v419
    %v421 = vpop.f32.mrb[0].mxu0
    %v422 = vpop.f32.mrb[0].mxu0
    %v423 = vadd.f32 %v138, %v422
    %v424 = vpop.f32.mrb[0].mxu0
    %425 = vmatprep.mubr.bf16.mxu0 0
    %426 = vmatmul.mubr.bf16.gmra.mrb[0].mxu0 %v276
    %v427 = vpop.f32.mrb[0].mxu0
    %v428 = vadd.f32 %v138, %v427
    %v429 = vpop.f32.mrb[0].mxu0
    %v430 = vpop.f32.mrb[0].mxu0
    %v431 = vadd.f32 %v138, %v430
    %v432 = vpop.f32.mrb[0].mxu0
    %433 = vmatprep.mubr.bf16.mxu0 0
    %434 = vmatmul.mubr.bf16.gmra.mrb[0].mxu0 %v279
    %v435 = vpop.f32.mrb[0].mxu0
    %v436 = vadd.f32 %v138, %v435
    %v437 = vpop.f32.mrb[0].mxu0
    %v438 = vpop.f32.mrb[0].mxu0
    %v439 = vadd.f32 %v138, %v438
    %v440 = vpop.f32.mrb[0].mxu0
    %441 = vdwg.mxu0
    %v442 = vld [vmem:[#allocation8] sm:$0xf]
    %v443 = vld [vmem:[#allocation8 + $0x4] sm:$0xf]
    %v444 = vld [vmem:[#allocation8 + $0x8] sm:$0xf]
    %v445 = vld [vmem:[#allocation8 + $0xc] sm:$0xf]
    %v446 = vld [vmem:[#allocation8 + $0x10] sm:$0xf]
    %v447 = vld [vmem:[#allocation8 + $0x14] sm:$0xf]
    %v448 = vld [vmem:[#allocation8 + $0x18] sm:$0xf]
    %v449 = vld [vmem:[#allocation8 + $0x1c] sm:$0xf]
    %v450 = vld [vmem:[#allocation8 + $0x20] sm:$0xf]
    %v451 = vld [vmem:[#allocation8 + $0x24] sm:$0xf]
    %v452 = vld [vmem:[#allocation8 + $0x28] sm:$0xf]
    %v453 = vld [vmem:[#allocation8 + $0x2c] sm:$0xf]
    %v454 = vld [vmem:[#allocation8 + $0x30] sm:$0xf]
    %v455 = vld [vmem:[#allocation8 + $0x34] sm:$0xf]
    %v456 = vld [vmem:[#allocation8 + $0x38] sm:$0xf]
    %v457 = vld [vmem:[#allocation8 + $0x3c] sm:$0xf]
    %v458 = vld [vmem:[#allocation8 + $0x40] sm:$0xf]
    %v459 = vld [vmem:[#allocation8 + $0x44] sm:$0xf]
    %v460 = vld [vmem:[#allocation8 + $0x48] sm:$0xf]
    %v461 = vld [vmem:[#allocation8 + $0x4c] sm:$0xf]
    %v462 = vld [vmem:[#allocation8 + $0x50] sm:$0xf]
    %v463 = vld [vmem:[#allocation8 + $0x54] sm:$0xf]
    %v464 = vld [vmem:[#allocation8 + $0x58] sm:$0xf]
    %v465 = vld [vmem:[#allocation8 + $0x5c] sm:$0xf]
    %v466 = vld [vmem:[#allocation8 + $0x60] sm:$0xf]
    %v467 = vld [vmem:[#allocation8 + $0x64] sm:$0xf]
    %v468 = vld [vmem:[#allocation8 + $0x68] sm:$0xf]
    %v469 = vld [vmem:[#allocation8 + $0x6c] sm:$0xf]
    %v470 = vld [vmem:[#allocation8 + $0x70] sm:$0xf]
    %v471 = vld [vmem:[#allocation8 + $0x74] sm:$0xf]
    %v472 = vld [vmem:[#allocation8 + $0x78] sm:$0xf]
    %v473 = vld [vmem:[#allocation8 + $0x7c] sm:$0xf]
    %v474 = vpack.c.bf16 %v319, %v316
    %v475 = vpack.c.bf16 %v327, %v324
    %v476 = vpack.c.bf16 %v335, %v332
    %v477 = vpack.c.bf16 %v343, %v340
    %v478 = vpack.c.bf16 %v351, %v348
    %v479 = vpack.c.bf16 %v359, %v356
    %v480 = vpack.c.bf16 %v367, %v364
    %v481 = vpack.c.bf16 %v375, %v372
    %v482 = vpack.c.bf16 %v383, %v380
    %v483 = vpack.c.bf16 %v391, %v388
    %v484 = vpack.c.bf16 %v399, %v396
    %v485 = vpack.c.bf16 %v407, %v404
    %v486 = vpack.c.bf16 %v415, %v412
    %v487 = vpack.c.bf16 %v423, %v420
    %v488 = vpack.c.bf16 %v431, %v428
    %v489 = vpack.c.bf16 %v439, %v436
    %v522 = vunpack.c.l.b16 %v442
    %v523 = vunpack.c.l.b16 %v443
    %v524 = vunpack.c.l.b16 %v444
    %v525 = vunpack.c.l.b16 %v445
    %v526 = vunpack.c.l.b16 %v446
    %v527 = vunpack.c.l.b16 %v447
    %v528 = vunpack.c.l.b16 %v448
    %v529 = vunpack.c.l.b16 %v449
    %v530 = vunpack.c.l.b16 %v450
    %v531 = vunpack.c.l.b16 %v451
    %v532 = vunpack.c.l.b16 %v452
    %v533 = vunpack.c.l.b16 %v453
    %v534 = vunpack.c.l.b16 %v454
    %v535 = vunpack.c.l.b16 %v455
    %v536 = vunpack.c.l.b16 %v456
    %v537 = vunpack.c.l.b16 %v457
    %v538 = vunpack.c.l.b16 %v458
    %v539 = vunpack.c.l.b16 %v459
    %v540 = vunpack.c.l.b16 %v460
    %v541 = vunpack.c.l.b16 %v461
    %v542 = vunpack.c.l.b16 %v462
    %v543 = vunpack.c.l.b16 %v463
    %v544 = vunpack.c.l.b16 %v464
    %v545 = vunpack.c.l.b16 %v465
    %v546 = vunpack.c.l.b16 %v466
    %v547 = vunpack.c.l.b16 %v467
    %v548 = vunpack.c.l.b16 %v468
    %v549 = vunpack.c.l.b16 %v469
    %v550 = vunpack.c.l.b16 %v470
    %v551 = vunpack.c.l.b16 %v471
    %v552 = vunpack.c.l.b16 %v472
    %v553 = vunpack.c.l.b16 %v473
    %v554 = vpack.c.b16 %v523, %v522
    %v555 = vpack.c.b16 %v525, %v524
    %v556 = vpack.c.b16 %v527, %v526
    %v557 = vpack.c.b16 %v529, %v528
    %v558 = vpack.c.b16 %v531, %v530
    %v559 = vpack.c.b16 %v533, %v532
    %v560 = vpack.c.b16 %v535, %v534
    %v561 = vpack.c.b16 %v537, %v536
    %v562 = vpack.c.b16 %v539, %v538
    %v563 = vpack.c.b16 %v541, %v540
    %v564 = vpack.c.b16 %v543, %v542
    %v565 = vpack.c.b16 %v545, %v544
    %v566 = vpack.c.b16 %v547, %v546
    %v567 = vpack.c.b16 %v549, %v548
    %v568 = vpack.c.b16 %v551, %v550
    %v569 = vpack.c.b16 %v553, %v552
    %586 = vxpose.xlu0.c.b16.start [1/8] %v554, 128
    %587 = vxpose.xlu0.c.b16.cont [2/8] %v555, 128
    %588 = vxpose.xlu0.c.b16.cont [3/8] %v556, 128
    %589 = vxpose.xlu0.c.b16.cont [4/8] %v557, 128
    %590 = vxpose.xlu0.c.b16.cont [5/8] %v558, 128
    %591 = vxpose.xlu0.c.b16.cont [6/8] %v559, 128
    %592 = vxpose.xlu0.c.b16.cont [7/8] %v560, 128
    %593 = vxpose.xlu0.c.b16.end [8/8] %v561, 128
    %v594 = vpop.trf.xlu0
    %v595 = vpop.trf.xlu0
    %v596 = vpop.trf.xlu0
    %v597 = vpop.trf.xlu0
    %v598 = vpop.trf.xlu0
    %v599 = vpop.trf.xlu0
    %v600 = vpop.trf.xlu0
    %v601 = vpop.trf.xlu0
    %602 = vxpose.xlu0.c.b16.start [1/8] %v562, 128
    %603 = vxpose.xlu0.c.b16.cont [2/8] %v563, 128
    %604 = vxpose.xlu0.c.b16.cont [3/8] %v564, 128
    %605 = vxpose.xlu0.c.b16.cont [4/8] %v565, 128
    %606 = vxpose.xlu0.c.b16.cont [5/8] %v566, 128
    %607 = vxpose.xlu0.c.b16.cont [6/8] %v567, 128
    %608 = vxpose.xlu0.c.b16.cont [7/8] %v568, 128
    %609 = vxpose.xlu0.c.b16.end [8/8] %v569, 128
    %v610 = vpop.trf.xlu0
    %v611 = vpop.trf.xlu0
    %v612 = vpop.trf.xlu0
    %v613 = vpop.trf.xlu0
    %v614 = vpop.trf.xlu0
    %v615 = vpop.trf.xlu0
    %v616 = vpop.trf.xlu0
    %v617 = vpop.trf.xlu0
    %618 = vmatprep.subr.bf16.mxu0 0
    %619 = vmatpush1.bf16.msra.mxu0 %v474
    %620 = vmatprep.subr.bf16.mxu0 0
    %621 = vmatpush1.bf16.msra.mxu0 %v475
    %622 = vmatprep.subr.bf16.mxu0 0
    %623 = vmatpush1.bf16.msra.mxu0 %v476
    %624 = vmatprep.subr.bf16.mxu0 0
    %625 = vmatpush1.bf16.msra.mxu0 %v477
    %626 = vmatprep.subr.bf16.mxu0 0
    %627 = vmatpush1.bf16.msra.mxu0 %v478
    %628 = vmatprep.subr.bf16.mxu0 0
    %629 = vmatpush1.bf16.msra.mxu0 %v479
    %630 = vmatprep.subr.bf16.mxu0 0
    %631 = vmatpush1.bf16.msra.mxu0 %v480
    %632 = vmatprep.subr.bf16.mxu0 0
    %633 = vmatpush1.bf16.msra.mxu0 %v481
    %634 = vmatprep.subr.bf16.mxu0 0
    %635 = vmatpush1.bf16.msra.mxu0 %v482
    %636 = vmatprep.subr.bf16.mxu0 0
    %637 = vmatpush1.bf16.msra.mxu0 %v483
    %638 = vmatprep.subr.bf16.mxu0 0
    %639 = vmatpush1.bf16.msra.mxu0 %v484
    %640 = vmatprep.subr.bf16.mxu0 0
    %641 = vmatpush1.bf16.msra.mxu0 %v485
    %642 = vmatprep.subr.bf16.mxu0 0
    %643 = vmatpush1.bf16.msra.mxu0 %v486
    %644 = vmatprep.subr.bf16.mxu0 0
    %645 = vmatpush1.bf16.msra.mxu0 %v487
    %646 = vmatprep.subr.bf16.mxu0 0
    %647 = vmatpush1.bf16.msra.mxu0 %v488
    %648 = vmatprep.subr.bf16.mxu0 0
    %649 = vmatpush1.bf16.msra.mxu0 %v489
    %650 = vmatprep.mubr.bf16.mxu0 %v610
    %651 = vmatmul.mubr.bf16.gmra.mrb[0].mxu0 %v594
    %v652 = vpop.f32.mrb[0].mxu0
    %v653 = vadd.f32 0.0, %v652
    %v654 = vpop.f32.mrb[0].mxu0
    %v655 = vpop.f32.mrb[0].mxu0
    %v656 = vadd.f32 0.0, %v655
    %v657 = vpop.f32.mrb[0].mxu0
    %658 = vmatprep.mubr.bf16.mxu0 %v611
    %659 = vmatmul.mubr.bf16.gmra.mrb[0].mxu0 %v595
    %v660 = vpop.f32.mrb[0].mxu0
    %v661 = vadd.f32 0.0, %v660
    %v662 = vpop.f32.mrb[0].mxu0
    %v663 = vpop.f32.mrb[0].mxu0
    %v664 = vadd.f32 0.0, %v663
    %v665 = vpop.f32.mrb[0].mxu0
    %666 = vmatprep.mubr.bf16.mxu0 %v612
    %667 = vmatmul.mubr.bf16.gmra.mrb[0].mxu0 %v596
    %v668 = vpop.f32.mrb[0].mxu0
    %v669 = vadd.f32 0.0, %v668
    %v670 = vpop.f32.mrb[0].mxu0
    %v671 = vpop.f32.mrb[0].mxu0
    %v672 = vadd.f32 0.0, %v671
    %v673 = vpop.f32.mrb[0].mxu0
    %674 = vmatprep.mubr.bf16.mxu0 %v613
    %675 = vmatmul.mubr.bf16.gmra.mrb[0].mxu0 %v597
    %v676 = vpop.f32.mrb[0].mxu0
    %v677 = vadd.f32 0.0, %v676
    %v678 = vpop.f32.mrb[0].mxu0
    %v679 = vpop.f32.mrb[0].mxu0
    %v680 = vadd.f32 0.0, %v679
    %v681 = vpop.f32.mrb[0].mxu0
    %682 = vdwg.mxu0
    %v683 = vld [vmem:[#allocation10] sm:$0xff]
    %v684 = vld [vmem:[#allocation10 + $0x8] sm:$0xff]
    %v685 = vld [vmem:[#allocation10 + $0x10] sm:$0xff]
    %v686 = vld [vmem:[#allocation10 + $0x18] sm:$0xff]
    %v687 = vld [vmem:[#allocation10 + $0x20] sm:$0xff]
    %v688 = vld [vmem:[#allocation10 + $0x28] sm:$0xff]
    %v689 = vld [vmem:[#allocation10 + $0x30] sm:$0xff]
    %v690 = vld [vmem:[#allocation10 + $0x38] sm:$0xff]
    %v691 = vadd.f32 %v683, %v653
    %v692 = vadd.f32 %v684, %v656
    %v693 = vadd.f32 %v685, %v661
    %v694 = vadd.f32 %v686, %v664
    %v695 = vadd.f32 %v687, %v669
    %v696 = vadd.f32 %v688, %v672
    %v697 = vadd.f32 %v689, %v677
    %v698 = vadd.f32 %v690, %v680
    %vm699 = vcmask 130048
    %700 = vst.msk [vmem:[#allocation10] sm:$0xff] %vm699, %v691
    %701 = vst.msk [vmem:[#allocation10 + $0x8] sm:$0xff] %vm699, %v692
    %702 = vst.msk [vmem:[#allocation10 + $0x10] sm:$0xff] %vm699, %v693
    %703 = vst.msk [vmem:[#allocation10 + $0x18] sm:$0xff] %vm699, %v694
    %704 = vst.msk [vmem:[#allocation10 + $0x20] sm:$0xff] %vm699, %v695
    %705 = vst.msk [vmem:[#allocation10 + $0x28] sm:$0xff] %vm699, %v696
    %706 = vst.msk [vmem:[#allocation10 + $0x30] sm:$0xff] %vm699, %v697
    %707 = vst.msk [vmem:[#allocation10 + $0x38] sm:$0xff] %vm699, %v698
    // Predicated region
    $region38: #{tpu_custom_call.1} parent=1 // pred_check
      _
    $region39: #{tpu_custom_call.1} parent=1 // pred_check_branch
      %709 = sbr.rel (0) target = $region41
    $region40: #{tpu_custom_call.1} parent=1 // pred_region
      %s711 = ssub.s32 1024, 1024
      %712 = vsyncadd [#allocation4], %s711
      %s713 = sshll.u32 [#allocation10], 4
      %s714 = int_to_ptr.vmem [resolvable:$true] %s713
      %719 = dma.vmem_to_hbm [thread:$0]  %s714, 1024, %s4, [#allocation4], 128, 128, 8
    $region41: #{tpu_custom_call.1} parent=1 // pred_fallthru
      _
    // Predicated region
    $region42: #{tpu_custom_call.1} parent=1 // pred_check
      _
    $region43: #{tpu_custom_call.1} parent=1 // pred_check_branch
      %721 = sbr.rel (0) target = $region45
    $region44: #{tpu_custom_call.1} parent=1 // pred_region
      %722 = dma.done [#allocation4], 1024
    $region45: #{tpu_custom_call.1} parent=1 // pred_fallthru
      _
    %723 = vsyncpa [#allocation3], 1
    %724 = vsyncpa [#allocation6], 1
    %725 = vsyncpa [#allocation9], 1
    %726 = vsyncpa [#allocation4], 1

</llo_original>
